<compile_context>
chip_gen: v6e
topology: v6e:2x2x1
jax: 0.10.0
libtpu: 0.0.40
codegen_flags: <defaults>
</compile_context>

<pallas_src>
import functools

import jax
import jax.numpy as jnp
from jax.experimental import pallas as pl
from jax.experimental.pallas import tpu as pltpu

DIMS = [(10, 32), (32, 64), (64, 64), (64, 32), (32, 10)]
N_LAYERS = len(DIMS)
IN_FEATS = DIMS[0][0]          # 10
OUT_FEATS = DIMS[-1][1]        # 10
PAD_IN = 16                    # first-layer K padded to a sublane multiple
PAD = 128                      # lane-dense width used for all hidden / output dims


def ffn_kernel(x_ref, w_ref, b_ref, o_ref):
    """Full 5-layer forward pass for one batch tile.

    x_ref: (TILE_B, 16)  f32  (cols 10..15 are zero)
    w_ref: (5, 128, 128) bf16 zero-padded weight slab (resident across grid steps)
    b_ref: (5, 1, 128)   f32  zero-padded bias slab   (resident across grid steps)
    o_ref: (TILE_B, 128) f32  (cols 10..127 come out exactly 0)
    """
    # Layer 1: only the first 16 (sublane-aligned) rows of slab 0 are non-zero.
    h = jnp.dot(x_ref[...].astype(jnp.bfloat16), w_ref[0, :PAD_IN, :],
                preferred_element_type=jnp.float32)
    h = jnp.maximum(h + b_ref[0], 0.0)
    # Layers 2..5: full 128x128 padded slabs (zero-padded rows/cols are no-ops,
    # so zeros propagate through the padded lanes).
    for l in range(1, N_LAYERS):
        h = jnp.dot(h.astype(jnp.bfloat16), w_ref[l],
                    preferred_element_type=jnp.float32)
        h = jnp.maximum(h + b_ref[l], 0.0)   # ReLU after every layer (acti='relu')
    o_ref[...] = h                            # unmasked, lane-dense store


def _round_up(n, m):
    return ((n + m - 1) // m) * m


def _pack_params(params):
    """Zero-pad and stack the 5 (W, b) pairs into two slabs (weights in bf16)."""
    w_slab = jnp.zeros((N_LAYERS, PAD, PAD), jnp.bfloat16)
    b_slab = jnp.zeros((N_LAYERS, 1, PAD), jnp.float32)
    for l, (din, dout) in enumerate(DIMS):
        w_slab = w_slab.at[l, :din, :dout].set(
            params[f"w{l + 1}"].astype(jnp.bfloat16))
        b_slab = b_slab.at[l, 0, :dout].set(
            params[f"b{l + 1}"].reshape(-1).astype(jnp.float32))
    return w_slab, b_slab


@functools.partial(jax.jit, static_argnames=("tile_b",))
def ffn_forward(x, params, *, tile_b=1024):
    """x: [B, 10] float32. params: dict of w{i} [in,out] and b{i} [1,out]."""
    B, F = x.shape
    assert F == IN_FEATS
    tile_b = _round_up(min(tile_b, _round_up(B, 8)), 8)
    b_pad = _round_up(B, tile_b)
    n_tiles = b_pad // tile_b

    # Zero-pad batch to a multiple of tile_b and the feature dim 10 -> 16.
    x_pad = jnp.zeros((b_pad, PAD_IN), jnp.float32).at[:B, :F].set(x)
    w_slab, b_slab = _pack_params(params)

    flops = 2 * B * sum(din * dout for din, dout in DIMS)
    bytes_accessed = (x_pad.size * 4 + w_slab.size * 2 + b_slab.size * 4
                      + b_pad * PAD * 4)

    out = pl.pallas_call(
        ffn_kernel,
        out_shape=jax.ShapeDtypeStruct((b_pad, PAD), jnp.float32),
        grid=(n_tiles,),
        in_specs=[
            pl.BlockSpec((tile_b, PAD_IN), lambda i: (i, 0)),          # x tile
            pl.BlockSpec((N_LAYERS, PAD, PAD), lambda i: (0, 0, 0)),   # resident W slab
            pl.BlockSpec((N_LAYERS, 1, PAD), lambda i: (0, 0, 0)),     # resident b slab
        ],
        out_specs=pl.BlockSpec((tile_b, PAD), lambda i: (i, 0)),
        compiler_params=pltpu.CompilerParams(
            dimension_semantics=("parallel",)),  # megacore split on v7x; no-op on v5e/v6e
        cost_estimate=pl.CostEstimate(
            flops=flops, transcendentals=0, bytes_accessed=bytes_accessed),
    )(x_pad, w_slab, b_slab)

    return out[:B, :OUT_FEATS]


def init_params(key):
    """Deterministic init mirroring nn.Linear default U(-1/sqrt(in), 1/sqrt(in)).
    Weights stored already transposed: shape [in, out]. Biases shape [1, out]."""
    params = {}
    for i, (din, dout) in enumerate(DIMS, start=1):
        key, kw, kb = jax.random.split(key, 3)
        bound = 1.0 / (din ** 0.5)
        params[f"w{i}"] = jax.random.uniform(
            kw, (din, dout), jnp.float32, minval=-bound, maxval=bound)
        params[f"b{i}"] = jax.random.uniform(
            kb, (1, dout), jnp.float32, minval=-bound, maxval=bound)
    return params


def ffn_reference(x, params):
    """Pure-JAX reference with the same bf16-input / f32-accumulate math."""
    h = x
    for i in range(1, N_LAYERS + 1):
        w = params[f"w{i}"].astype(jnp.bfloat16)
        h = jnp.dot(h.astype(jnp.bfloat16), w, preferred_element_type=jnp.float32)
        h = jnp.maximum(h + params[f"b{i}"], 0.0)
    return h


if __name__ == "__main__":
    key = jax.random.PRNGKey(0)
    key, kx = jax.random.split(key)
    batch = 192                      # small, but > tile_b so the grid has 3 steps
    x = jax.random.normal(kx, (batch, IN_FEATS), jnp.float32)

    params = init_params(key)

    out = ffn_forward(x, params, tile_b=64)   # grid=(3,) exercises the pipelined batch axis
    out = jax.block_until_ready(out)

    ref = ffn_reference(x, params)
    assert out.shape == (batch, OUT_FEATS)
    max_err = float(jnp.max(jnp.abs(out - ref)))
    assert jnp.allclose(out, ref, atol=1e-2, rtol=1e-2), (
        f"mismatch vs JAX reference (max abs err {max_err})")

    print("KERNEL_OK")
</pallas_src>

<mosaic_0001>
module attributes {stable_mosaic.version = 11 : i64} {
  func.func @ffn_kernel(%arg0: i32, %arg1: memref<64x16xf32, #tpu.memory_space<vmem>>, %arg2: memref<5x128x128xbf16, #tpu.memory_space<vmem>>, %arg3: memref<5x1x128xf32, #tpu.memory_space<vmem>>, %arg4: memref<64x128xf32, #tpu.memory_space<vmem>>) attributes {dimension_semantics = [#tpu.dimension_semantics<parallel>], iteration_bounds = array<i64: 3>, scalar_prefetch = 0 : i64, scratch_operands = 0 : i64, tpu.core_type = #tpu.core_type<tc>, window_params = [{transform_indices = @transform_0, window_bounds = array<i64: 64, 16>}, {pipeline_mode = #tpu.pipeline_mode<synchronous>, transform_indices = @transform_1, window_bounds = array<i64: 5, 128, 128>}, {pipeline_mode = #tpu.pipeline_mode<synchronous>, transform_indices = @transform_2, window_bounds = array<i64: 5, 1, 128>}, {transform_indices = @transform_3, window_bounds = array<i64: 64, 128>}]} {
    %c0 = arith.constant 0 : index
    %c0_0 = arith.constant 0 : index
    %0 = vector.load %arg1[%c0, %c0_0] : memref<64x16xf32, #tpu.memory_space<vmem>>, vector<64x16xf32>
    %1 = arith.truncf %0 : vector<64x16xf32> to vector<64x16xbf16>
    %c0_1 = arith.constant 0 : index
    %c0_2 = arith.constant 0 : index
    %c0_3 = arith.constant 0 : index
    %2 = vector.load %arg2[%c0_1, %c0_2, %c0_3] : memref<5x128x128xbf16, #tpu.memory_space<vmem>>, vector<1x16x128xbf16>
    %3 = vector.shape_cast %2 : vector<1x16x128xbf16> to vector<16x128xbf16>
    %cst = arith.constant dense<0.000000e+00> : vector<64x128xf32>
    %4 = tpu.matmul %1, %3, %cst {dimension_numbers = #tpu.dot_dimension_numbers<[1], [0], [0], [1], [0, 0, 1, 1], [], []>} : vector<64x16xbf16>, vector<16x128xbf16>, vector<64x128xf32> -> vector<64x128xf32>
    %c0_4 = arith.constant 0 : index
    %c0_5 = arith.constant 0 : index
    %c0_6 = arith.constant 0 : index
    %5 = vector.load %arg3[%c0_4, %c0_5, %c0_6] : memref<5x1x128xf32, #tpu.memory_space<vmem>>, vector<1x1x128xf32>
    %6 = vector.shape_cast %5 : vector<1x1x128xf32> to vector<1x128xf32>
    %7 = vector.broadcast %6 : vector<1x128xf32> to vector<64x128xf32>
    %8 = arith.addf %4, %7 : vector<64x128xf32>
    %cst_7 = arith.constant 0.000000e+00 : f32
    %9 = vector.broadcast %cst_7 : f32 to vector<64x128xf32>
    %10 = arith.maximumf %8, %9 : vector<64x128xf32>
    %11 = arith.truncf %10 : vector<64x128xf32> to vector<64x128xbf16>
    %c1 = arith.constant 1 : index
    %c0_8 = arith.constant 0 : index
    %c0_9 = arith.constant 0 : index
    %12 = vector.load %arg2[%c1, %c0_8, %c0_9] : memref<5x128x128xbf16, #tpu.memory_space<vmem>>, vector<1x128x128xbf16>
    %13 = vector.shape_cast %12 : vector<1x128x128xbf16> to vector<128x128xbf16>
    %cst_10 = arith.constant dense<0.000000e+00> : vector<64x128xf32>
    %14 = tpu.matmul %11, %13, %cst_10 {dimension_numbers = #tpu.dot_dimension_numbers<[1], [0], [0], [1], [0, 0, 1, 1], [], []>} : vector<64x128xbf16>, vector<128x128xbf16>, vector<64x128xf32> -> vector<64x128xf32>
    %c1_11 = arith.constant 1 : index
    %c0_12 = arith.constant 0 : index
    %c0_13 = arith.constant 0 : index
    %15 = vector.load %arg3[%c1_11, %c0_12, %c0_13] : memref<5x1x128xf32, #tpu.memory_space<vmem>>, vector<1x1x128xf32>
    %16 = vector.shape_cast %15 : vector<1x1x128xf32> to vector<1x128xf32>
    %17 = vector.broadcast %16 : vector<1x128xf32> to vector<64x128xf32>
    %18 = arith.addf %14, %17 : vector<64x128xf32>
    %cst_14 = arith.constant 0.000000e+00 : f32
    %19 = vector.broadcast %cst_14 : f32 to vector<64x128xf32>
    %20 = arith.maximumf %18, %19 : vector<64x128xf32>
    %21 = arith.truncf %20 : vector<64x128xf32> to vector<64x128xbf16>
    %c2 = arith.constant 2 : index
    %c0_15 = arith.constant 0 : index
    %c0_16 = arith.constant 0 : index
    %22 = vector.load %arg2[%c2, %c0_15, %c0_16] : memref<5x128x128xbf16, #tpu.memory_space<vmem>>, vector<1x128x128xbf16>
    %23 = vector.shape_cast %22 : vector<1x128x128xbf16> to vector<128x128xbf16>
    %cst_17 = arith.constant dense<0.000000e+00> : vector<64x128xf32>
    %24 = tpu.matmul %21, %23, %cst_17 {dimension_numbers = #tpu.dot_dimension_numbers<[1], [0], [0], [1], [0, 0, 1, 1], [], []>} : vector<64x128xbf16>, vector<128x128xbf16>, vector<64x128xf32> -> vector<64x128xf32>
    %c2_18 = arith.constant 2 : index
    %c0_19 = arith.constant 0 : index
    %c0_20 = arith.constant 0 : index
    %25 = vector.load %arg3[%c2_18, %c0_19, %c0_20] : memref<5x1x128xf32, #tpu.memory_space<vmem>>, vector<1x1x128xf32>
    %26 = vector.shape_cast %25 : vector<1x1x128xf32> to vector<1x128xf32>
    %27 = vector.broadcast %26 : vector<1x128xf32> to vector<64x128xf32>
    %28 = arith.addf %24, %27 : vector<64x128xf32>
    %cst_21 = arith.constant 0.000000e+00 : f32
    %29 = vector.broadcast %cst_21 : f32 to vector<64x128xf32>
    %30 = arith.maximumf %28, %29 : vector<64x128xf32>
    %31 = arith.truncf %30 : vector<64x128xf32> to vector<64x128xbf16>
    %c3 = arith.constant 3 : index
    %c0_22 = arith.constant 0 : index
    %c0_23 = arith.constant 0 : index
    %32 = vector.load %arg2[%c3, %c0_22, %c0_23] : memref<5x128x128xbf16, #tpu.memory_space<vmem>>, vector<1x128x128xbf16>
    %33 = vector.shape_cast %32 : vector<1x128x128xbf16> to vector<128x128xbf16>
    %cst_24 = arith.constant dense<0.000000e+00> : vector<64x128xf32>
    %34 = tpu.matmul %31, %33, %cst_24 {dimension_numbers = #tpu.dot_dimension_numbers<[1], [0], [0], [1], [0, 0, 1, 1], [], []>} : vector<64x128xbf16>, vector<128x128xbf16>, vector<64x128xf32> -> vector<64x128xf32>
    %c3_25 = arith.constant 3 : index
    %c0_26 = arith.constant 0 : index
    %c0_27 = arith.constant 0 : index
    %35 = vector.load %arg3[%c3_25, %c0_26, %c0_27] : memref<5x1x128xf32, #tpu.memory_space<vmem>>, vector<1x1x128xf32>
    %36 = vector.shape_cast %35 : vector<1x1x128xf32> to vector<1x128xf32>
    %37 = vector.broadcast %36 : vector<1x128xf32> to vector<64x128xf32>
    %38 = arith.addf %34, %37 : vector<64x128xf32>
    %cst_28 = arith.constant 0.000000e+00 : f32
    %39 = vector.broadcast %cst_28 : f32 to vector<64x128xf32>
    %40 = arith.maximumf %38, %39 : vector<64x128xf32>
    %41 = arith.truncf %40 : vector<64x128xf32> to vector<64x128xbf16>
    %c4 = arith.constant 4 : index
    %c0_29 = arith.constant 0 : index
    %c0_30 = arith.constant 0 : index
    %42 = vector.load %arg2[%c4, %c0_29, %c0_30] : memref<5x128x128xbf16, #tpu.memory_space<vmem>>, vector<1x128x128xbf16>
    %43 = vector.shape_cast %42 : vector<1x128x128xbf16> to vector<128x128xbf16>
    %cst_31 = arith.constant dense<0.000000e+00> : vector<64x128xf32>
    %44 = tpu.matmul %41, %43, %cst_31 {dimension_numbers = #tpu.dot_dimension_numbers<[1], [0], [0], [1], [0, 0, 1, 1], [], []>} : vector<64x128xbf16>, vector<128x128xbf16>, vector<64x128xf32> -> vector<64x128xf32>
    %c4_32 = arith.constant 4 : index
    %c0_33 = arith.constant 0 : index
    %c0_34 = arith.constant 0 : index
    %45 = vector.load %arg3[%c4_32, %c0_33, %c0_34] : memref<5x1x128xf32, #tpu.memory_space<vmem>>, vector<1x1x128xf32>
    %46 = vector.shape_cast %45 : vector<1x1x128xf32> to vector<1x128xf32>
    %47 = vector.broadcast %46 : vector<1x128xf32> to vector<64x128xf32>
    %48 = arith.addf %44, %47 : vector<64x128xf32>
    %cst_35 = arith.constant 0.000000e+00 : f32
    %49 = vector.broadcast %cst_35 : f32 to vector<64x128xf32>
    %50 = arith.maximumf %48, %49 : vector<64x128xf32>
    %c0_36 = arith.constant 0 : index
    %c0_37 = arith.constant 0 : index
    %51 = vector.load %arg4[%c0_36, %c0_37] : memref<64x128xf32, #tpu.memory_space<vmem>>, vector<64x128xf32>
    tpu.vector_store %arg4[%c0_36, %c0_37], %50 {strides = array<i32>} : memref<64x128xf32, #tpu.memory_space<vmem>>, vector<64x128xf32>,
    return
  }
  func.func @transform_0(%arg0: i32) -> (i32, i32) {
    %c0_i32 = arith.constant 0 : i32
    %c0_i32_0 = arith.constant 0 : i32
    return %arg0, %c0_i32 : i32, i32
  }
  func.func @transform_1(%arg0: i32) -> (i32, i32, i32) {
    %c0_i32 = arith.constant 0 : i32
    %c0_i32_0 = arith.constant 0 : i32
    %c0_i32_1 = arith.constant 0 : i32
    %c0_i32_2 = arith.constant 0 : i32
    return %c0_i32, %c0_i32_0, %c0_i32_1 : i32, i32, i32
  }
  func.func @transform_2(%arg0: i32) -> (i32, i32, i32) {
    %c0_i32 = arith.constant 0 : i32
    %c0_i32_0 = arith.constant 0 : i32
    %c0_i32_1 = arith.constant 0 : i32
    %c0_i32_2 = arith.constant 0 : i32
    return %c0_i32, %c0_i32_0, %c0_i32_1 : i32, i32, i32
  }
  func.func @transform_3(%arg0: i32) -> (i32, i32) {
    %c0_i32 = arith.constant 0 : i32
    %c0_i32_0 = arith.constant 0 : i32
    return %arg0, %c0_i32 : i32, i32
  }
}

</mosaic_0001>

<llo_original>
// kernel: ffn_forward.1
$region0: #{ffn_forward.1}
  #allocation0 [shape = 'u32[]', space=smem, size = 0x4, offset = 0x4, fixed_abs, tag = 'smem constant byte address 0x4 - core index']
  #allocation1 [shape = 'u32[144,128]{1,0:T(1,128)}', space=vmem, size = 0x12000, scoped, tag = 'internal scratch']
  %s0 = inlined_call_operand.vmem [shape: f32[192,16], index: 0, kind: input, shape index: {}]
  %s1 = inlined_call_operand.vmem [shape: bf16[5,128,128], index: 1, kind: input, shape index: {}]
  %s2 = inlined_call_operand.vmem [shape: f32[5,1,128], index: 2, kind: input, shape index: {}]
  %s3 = inlined_call_operand.vmem [shape: f32[192,128], index: 3, kind: output, shape index: {}]
  %s4 = sld [smem:[#allocation0]]
  $region45: #{ffn_forward.1} parent=0
    _
  %s6 = ssub.s32 1, %s4
  %s7 = scalar_select 0, %s6, %s4
  loop: start=0, step=1, limit=5
  $region2: #{ffn_forward.1} parent=0 // loop_pre_header
    _
  $region3: #{ffn_forward.1} parent=0 // loop_header
    %s9 = sphi 0, %s13
    %p10 = scmp.ge.s32.totalorder %s9, 5
    %s19 = sphi 0, %s21
    %s22 = sphi 0, %s19
    %s23 = sphi 0, %s22
    %s39 = sphi 0, %s23
    %s43 = sphi 0, %s43
    %s45 = sphi 0, %s43
    %s46 = sphi 0, %s45
    %s60 = sphi 0, %s46
    %s64 = sphi 0, %s64
    %s66 = sphi 0, %s64
    %s67 = sphi 0, %s66
    %s81 = sphi 0, %s67
    %s87 = sphi 0, %s89
    %s90 = sphi 0, %s87
    %s91 = sphi 0, %s90
    %s107 = sphi 0, %s91
  $region4: #{ffn_forward.1} parent=0 // loop_header_branch
    %12 = sbr.rel (%p10) target = $region8
  $region5: #{ffn_forward.1} parent=0 // loop_body
    %s14 = ssub.s32 %s9, 1
    %s15 = ssub.s32 %s9, 2
    %s16 = sadd.s32 %s9, 1
    %s17 = ssub.s32 %s9, %s16
    %p18 = scmp.eq.s32.totalorder %s17, 0
    %s20 = sadd.s32 %s19, 1
    %s21 = scalar_select %p18, %s19, %s20
    %p24 = pneg %p18
    %p25 = scmp.eq.s32.totalorder %s9, 2
    %p26 = por %p24, %p25
    %p27 = scmp.ne.s32.totalorder %s19, %s22
    %p28 = scmp.eq.s32.totalorder %s9, 0
    %p29 = por %p27, %p28
    %p30 = scmp.ne.s32.totalorder %s19, %s22
    %p31 = scmp.eq.s32.totalorder %s14, 2
    %p32 = por %p30, %p31
    %p33 = scmp.ne.s32.totalorder %s22, %s23
    %p34 = scmp.eq.s32.totalorder %s14, 0
    %p35 = por %p33, %p34
    %p36 = scmp.ne.s32.totalorder %s22, %s23
    %p37 = scmp.eq.s32.totalorder %s15, 2
    %p38 = por %p36, %p37
    %p40 = scmp.ne.s32.totalorder %s23, %s39
    %p41 = scmp.eq.s32.totalorder %s15, 0
    %p42 = por %p40, %p41
    %s44 = sadd.s32 %s43, 1
    %p47 = scmp.eq.s32.totalorder %s9, 2
    %p48 = scmp.ne.s32.totalorder %s43, %s45
    %p49 = scmp.eq.s32.totalorder %s9, 0
    %p50 = por %p48, %p49
    %p51 = scmp.ne.s32.totalorder %s43, %s45
    %p52 = scmp.eq.s32.totalorder %s14, 2
    %p53 = por %p51, %p52
    %p54 = scmp.ne.s32.totalorder %s45, %s46
    %p55 = scmp.eq.s32.totalorder %s14, 0
    %p56 = por %p54, %p55
    %p57 = scmp.ne.s32.totalorder %s45, %s46
    %p58 = scmp.eq.s32.totalorder %s15, 2
    %p59 = por %p57, %p58
    %p61 = scmp.ne.s32.totalorder %s46, %s60
    %p62 = scmp.eq.s32.totalorder %s15, 0
    %p63 = por %p61, %p62
    %s65 = sadd.s32 %s64, 1
    %p68 = scmp.eq.s32.totalorder %s9, 2
    %p69 = scmp.ne.s32.totalorder %s64, %s66
    %p70 = scmp.eq.s32.totalorder %s9, 0
    %p71 = por %p69, %p70
    %p72 = scmp.ne.s32.totalorder %s64, %s66
    %p73 = scmp.eq.s32.totalorder %s14, 2
    %p74 = por %p72, %p73
    %p75 = scmp.ne.s32.totalorder %s66, %s67
    %p76 = scmp.eq.s32.totalorder %s14, 0
    %p77 = por %p75, %p76
    %p78 = scmp.ne.s32.totalorder %s66, %s67
    %p79 = scmp.eq.s32.totalorder %s15, 2
    %p80 = por %p78, %p79
    %p82 = scmp.ne.s32.totalorder %s67, %s81
    %p83 = scmp.eq.s32.totalorder %s15, 0
    %p84 = por %p82, %p83
    %s85 = ssub.s32 %s9, %s16
    %p86 = scmp.eq.s32.totalorder %s85, 0
    %s88 = sadd.s32 %s87, 1
    %s89 = scalar_select %p86, %s87, %s88
    %p92 = pneg %p86
    %p93 = scmp.eq.s32.totalorder %s9, 2
    %p94 = por %p92, %p93
    %p95 = scmp.ne.s32.totalorder %s87, %s90
    %p96 = scmp.eq.s32.totalorder %s9, 0
    %p97 = por %p95, %p96
    %p98 = scmp.ne.s32.totalorder %s87, %s90
    %p99 = scmp.eq.s32.totalorder %s14, 2
    %p100 = por %p98, %p99
    %p101 = scmp.ne.s32.totalorder %s90, %s91
    %p102 = scmp.eq.s32.totalorder %s14, 0
    %p103 = por %p101, %p102
    %p104 = scmp.ne.s32.totalorder %s90, %s91
    %p105 = scmp.eq.s32.totalorder %s15, 2
    %p106 = por %p104, %p105
    %p108 = scmp.ne.s32.totalorder %s91, %s107
    %p109 = scmp.eq.s32.totalorder %s15, 0
    %p110 = por %p108, %p109
    %p111 = scmp.le.s32.totalorder 1, %s9
    %p112 = scmp.lt.s32.totalorder %s9, 4
    %p113 = pnand %p111, %p112
    %p114 = pneg %p113
    // Predicated region
    $region9: #{ffn_forward.1} parent=5 // pred_check
      _
    $region10: #{ffn_forward.1} parent=5 // pred_check_branch
      %116 = sbr.rel (%p113) target = $region12
    $region11: #{ffn_forward.1} parent=5 // pred_region
      %s117 = ssub.s32 %s9, 1
      // Predicated region
      $region13: #{ffn_forward.1} parent=11 // pred_check
        %p118 = pneg %p56
      $region14: #{ffn_forward.1} parent=11 // pred_check_branch
        %120 = sbr.rel (%p118) target = $region16
      $region15: #{ffn_forward.1} parent=11 // pred_region
        _
      $region16: #{ffn_forward.1} parent=11 // pred_fallthru
        _
      // Predicated region
      $region17: #{ffn_forward.1} parent=11 // pred_check
        %p121 = pneg %p77
      $region18: #{ffn_forward.1} parent=11 // pred_check_branch
        %123 = sbr.rel (%p121) target = $region20
      $region19: #{ffn_forward.1} parent=11 // pred_region
        _
      $region20: #{ffn_forward.1} parent=11 // pred_fallthru
        _
    $region12: #{ffn_forward.1} parent=5 // pred_fallthru
      _
    %p124 = scmp.lt.s32.totalorder %s9, 3
    // Predicated region
    $region21: #{ffn_forward.1} parent=5 // pred_check
      %p125 = pneg %p124
    $region22: #{ffn_forward.1} parent=5 // pred_check_branch
      %127 = sbr.rel (%p125) target = $region24
    $region23: #{ffn_forward.1} parent=5 // pred_region
      // Predicated region
      $region25: #{ffn_forward.1} parent=23 // pred_check
        %p128 = pneg %p29
      $region26: #{ffn_forward.1} parent=23 // pred_check_branch
        %130 = sbr.rel (%p128) target = $region28
      $region27: #{ffn_forward.1} parent=23 // pred_region
        %s131 = smul.u32 8, %s9
        %p132 = scmp.lt.s32.totalorder %s131, 23
        %s133 = scalar_select %p132, %s131, 23
        %s134 = smul.addr %s133, 8
        %s135 = scalar_lea.vmem %s0, %s134
        %s136 = smul.u32 8, %s9
      $region28: #{ffn_forward.1} parent=23 // pred_fallthru
        _
    $region24: #{ffn_forward.1} parent=5 // pred_fallthru
      _
    %p137 = scmp.le.s32.totalorder 1, %s9
    %p138 = scmp.lt.s32.totalorder %s9, 4
    %p139 = pnand %p137, %p138
    %p140 = pneg %p139
    // Predicated region
    $region29: #{ffn_forward.1} parent=5 // pred_check
      _
    $region30: #{ffn_forward.1} parent=5 // pred_check_branch
      %142 = sbr.rel (%p139) target = $region32
    $region31: #{ffn_forward.1} parent=5 // pred_region
      %s143 = ssub.s32 %s9, 1
      %s144 = smul.u32 8, %s14
      %p145 = scmp.lt.s32.totalorder %s144, 23
      %s146 = scalar_select %p145, %s144, 23
      %s147 = smul.addr %s146, 8
      %s148 = scalar_lea.vmem %s0, %s147
      %p149 = pneg %p35
      %p150 = pneg %p32
      %p151 = pneg %p56
      %p152 = pneg %p53
      %p153 = pneg %p77
      %p154 = pneg %p74
      %p155 = pneg %p103
      %p156 = pneg %p100
      %s157 = smul.u32 8, %s14
      %p158 = scmp.lt.s32.totalorder %s157, 23
      %s159 = scalar_select %p158, %s157, 23
      %s160 = smul.addr %s159, 8
      %s161 = scalar_lea.vmem %s3, %s160
      %s162 = smul.u32 8, %s14
      %p163 = scmp.lt.s32.totalorder %s162, 23
      %s164 = scalar_select %p163, %s162, 23
      %s165 = smul.addr %s164, 8
      %s166 = scalar_lea.vmem %s0, %s165
      %s167 = smul.u32 8, %s14
      %s168 = smul.u32 8, %s14
      %p169 = scmp.lt.s32.totalorder %s168, 23
      %s170 = scalar_select %p169, %s168, 23
      %s171 = smul.addr %s170, 8
      %s172 = scalar_lea.vmem %s3, %s171
      %s173 = smul.u32 8, %s14
      %v175 = vld [vmem:[%s166] sm:$0xff]
      %v176 = vld [vmem:[%s166 + $0x8] sm:$0xff]
      %v177 = vld [vmem:[%s166 + $0x10] sm:$0xff]
      %v178 = vld [vmem:[%s166 + $0x18] sm:$0xff]
      %v179 = vld [vmem:[%s166 + $0x20] sm:$0xff]
      %v180 = vld [vmem:[%s166 + $0x28] sm:$0xff]
      %v181 = vld [vmem:[%s166 + $0x30] sm:$0xff]
      %v182 = vld [vmem:[%s166 + $0x38] sm:$0xff]
      %v183 = vpack.c.bf16 %v176, %v175
      %v184 = vpack.c.bf16 %v178, %v177
      %v185 = vpack.c.bf16 %v180, %v179
      %v186 = vpack.c.bf16 %v182, %v181
      %v187 = vld [vmem:[%s1] sm:$0xf]
      %v188 = vld [vmem:[%s1 + $0x4] sm:$0xf]
      %v189 = vld [vmem:[%s2] sm:$0x1]
      %v191 = vlaneseq
      %v192 = vshrl.u32 %v191, 7
      %v193 = vsub.s32 0, %v192
      %v194 = vrot.slane %v189, %v193
      %v198 = vunpack.c.l.b16 %v187
      %v199 = vunpack.c.l.b16 %v188
      %v200 = vpack.c.b16 %v199, %v198
      %vm202 = vcmask 130048
      %v204 = vsel %vm202, %v183, 0
      %v207 = vsel %vm202, %v184, 0
      %v210 = vsel %vm202, %v185, 0
      %v213 = vsel %vm202, %v186, 0
      %215 = vmatprep.subr.bf16.mxu0 0
      %216 = vmatpush1.bf16.msra.mxu0 0
      %217 = vmatprep.subr.bf16.mxu0 0
      %218 = vmatpush1.bf16.msra.mxu0 0
      %219 = vmatprep.subr.bf16.mxu0 0
      %220 = vmatpush1.bf16.msra.mxu0 0
      %221 = vmatprep.subr.bf16.mxu0 0
      %222 = vmatpush1.bf16.msra.mxu0 0
      %223 = vmatprep.subr.bf16.mxu0 0
      %224 = vmatpush1.bf16.msra.mxu0 0
      %225 = vmatprep.subr.bf16.mxu0 0
      %226 = vmatpush1.bf16.msra.mxu0 0
      %227 = vmatprep.subr.bf16.mxu0 0
      %228 = vmatpush1.bf16.msra.mxu0 0
      %229 = vmatprep.subr.bf16.mxu0 0
      %230 = vmatpush1.bf16.msra.mxu0 %v200
      %231 = vmatprep.subr.bf16.mxu0 0
      %232 = vmatpush2.bf16.msra.mxu0 0
      %233 = vmatprep.subr.bf16.mxu0 0
      %234 = vmatpush2.bf16.msra.mxu0 0
      %235 = vmatprep.subr.bf16.mxu0 0
      %236 = vmatpush2.bf16.msra.mxu0 0
      %237 = vmatprep.subr.bf16.mxu0 0
      %238 = vmatpush2.bf16.msra.mxu0 0
      %239 = vmatprep.subr.bf16.mxu0 0
      %240 = vmatpush2.bf16.msra.mxu0 0
      %241 = vmatprep.subr.bf16.mxu0 0
      %242 = vmatpush2.bf16.msra.mxu0 0
      %243 = vmatprep.subr.bf16.mxu0 0
      %244 = vmatpush2.bf16.msra.mxu0 0
      %245 = vmatprep.subr.bf16.mxu0 0
      %246 = vmatpush2.bf16.msra.mxu0 0
      %247 = vmatprep.mubr.bf16.mxu0 0
      %248 = vmatmul.mubr.bf16.gmra.mxu0 %v204
      %v249 = vpop.f32.mrf.mxu0
      %v250 = vadd.f32 %v194, %v249
      %v251 = vpop.f32.mrf.mxu0
      %v252 = vpop.f32.mrf.mxu0
      %v253 = vadd.f32 %v194, %v252
      %v254 = vpop.f32.mrf.mxu0
      %255 = vmatprep.mubr.bf16.mxu0 0
      %256 = vmatmul.mubr.bf16.gmra.mxu0 %v207
      %v257 = vpop.f32.mrf.mxu0
      %v258 = vadd.f32 %v194, %v257
      %v259 = vpop.f32.mrf.mxu0
      %v260 = vpop.f32.mrf.mxu0
      %v261 = vadd.f32 %v194, %v260
      %v262 = vpop.f32.mrf.mxu0
      %263 = vmatprep.mubr.bf16.mxu0 0
      %264 = vmatmul.mubr.bf16.gmra.mxu0 %v210
      %v265 = vpop.f32.mrf.mxu0
      %v266 = vadd.f32 %v194, %v265
      %v267 = vpop.f32.mrf.mxu0
      %v268 = vpop.f32.mrf.mxu0
      %v269 = vadd.f32 %v194, %v268
      %v270 = vpop.f32.mrf.mxu0
      %271 = vmatprep.mubr.bf16.mxu0 0
      %272 = vmatmul.mubr.bf16.gmra.mxu0 %v213
      %v273 = vpop.f32.mrf.mxu0
      %v274 = vadd.f32 %v194, %v273
      %v275 = vpop.f32.mrf.mxu0
      %v276 = vpop.f32.mrf.mxu0
      %v277 = vadd.f32 %v194, %v276
      %v278 = vpop.f32.mrf.mxu0
      %279 = vdwg.mxu0
      %v280 = vmax.f32 %v250, 0.0
      %v281 = vmax.f32 %v253, 0.0
      %v282 = vmax.f32 %v258, 0.0
      %v283 = vmax.f32 %v261, 0.0
      %v284 = vmax.f32 %v266, 0.0
      %v285 = vmax.f32 %v269, 0.0
      %v286 = vmax.f32 %v274, 0.0
      %v287 = vmax.f32 %v277, 0.0
      %v288 = vpack.c.bf16 %v281, %v280
      %v289 = vpack.c.bf16 %v283, %v282
      %v290 = vpack.c.bf16 %v285, %v284
      %v291 = vpack.c.bf16 %v287, %v286
      %s292 = scalar_lea.vmem %s1, 64
      %v293 = vld [vmem:[%s292] sm:$0xf]
      %v294 = vld [vmem:[%s292 + $0x4] sm:$0xf]
      %v295 = vld [vmem:[%s292 + $0x8] sm:$0xf]
      %v296 = vld [vmem:[%s292 + $0xc] sm:$0xf]
      %v297 = vld [vmem:[%s292 + $0x10] sm:$0xf]
      %v298 = vld [vmem:[%s292 + $0x14] sm:$0xf]
      %v299 = vld [vmem:[%s292 + $0x18] sm:$0xf]
      %v300 = vld [vmem:[%s292 + $0x1c] sm:$0xf]
      %v301 = vld [vmem:[%s292 + $0x20] sm:$0xf]
      %v302 = vld [vmem:[%s292 + $0x24] sm:$0xf]
      %v303 = vld [vmem:[%s292 + $0x28] sm:$0xf]
      %v304 = vld [vmem:[%s292 + $0x2c] sm:$0xf]
      %v305 = vld [vmem:[%s292 + $0x30] sm:$0xf]
      %v306 = vld [vmem:[%s292 + $0x34] sm:$0xf]
      %v307 = vld [vmem:[%s292 + $0x38] sm:$0xf]
      %v308 = vld [vmem:[%s292 + $0x3c] sm:$0xf]
      %s309 = scalar_lea.vmem %s2, 1
      %v310 = vld [vmem:[%s309] sm:$0x1]
      %v312 = vlaneseq
      %v313 = vshrl.u32 %v312, 7
      %v314 = vsub.s32 0, %v313
      %v315 = vrot.slane %v310, %v314
      %v333 = vunpack.c.l.b16 %v293
      %v334 = vunpack.c.l.b16 %v294
      %v335 = vunpack.c.l.b16 %v295
      %v336 = vunpack.c.l.b16 %v296
      %v337 = vunpack.c.l.b16 %v297
      %v338 = vunpack.c.l.b16 %v298
      %v339 = vunpack.c.l.b16 %v299
      %v340 = vunpack.c.l.b16 %v300
      %v341 = vunpack.c.l.b16 %v301
      %v342 = vunpack.c.l.b16 %v302
      %v343 = vunpack.c.l.b16 %v303
      %v344 = vunpack.c.l.b16 %v304
      %v345 = vunpack.c.l.b16 %v305
      %v346 = vunpack.c.l.b16 %v306
      %v347 = vunpack.c.l.b16 %v307
      %v348 = vunpack.c.l.b16 %v308
      %v349 = vpack.c.b16 %v334, %v333
      %v350 = vpack.c.b16 %v336, %v335
      %v351 = vpack.c.b16 %v338, %v337
      %v352 = vpack.c.b16 %v340, %v339
      %v353 = vpack.c.b16 %v342, %v341
      %v354 = vpack.c.b16 %v344, %v343
      %v355 = vpack.c.b16 %v346, %v345
      %v356 = vpack.c.b16 %v348, %v347
      %365 = vmatprep.subr.bf16.mxu0 0
      %366 = vmatpush1.bf16.msra.mxu0 %v356
      %367 = vmatprep.subr.bf16.mxu0 0
      %368 = vmatpush1.bf16.msra.mxu0 %v355
      %369 = vmatprep.subr.bf16.mxu0 0
      %370 = vmatpush1.bf16.msra.mxu0 %v354
      %371 = vmatprep.subr.bf16.mxu0 0
      %372 = vmatpush1.bf16.msra.mxu0 %v353
      %373 = vmatprep.subr.bf16.mxu0 0
      %374 = vmatpush1.bf16.msra.mxu0 %v352
      %375 = vmatprep.subr.bf16.mxu0 0
      %376 = vmatpush1.bf16.msra.mxu0 %v351
      %377 = vmatprep.subr.bf16.mxu0 0
      %378 = vmatpush1.bf16.msra.mxu0 %v350
      %379 = vmatprep.subr.bf16.mxu0 0
      %380 = vmatpush1.bf16.msra.mxu0 %v349
      %381 = vmatprep.subr.bf16.mxu0 0
      %382 = vmatpush2.bf16.msra.mxu0 0
      %383 = vmatprep.subr.bf16.mxu0 0
      %384 = vmatpush2.bf16.msra.mxu0 0
      %385 = vmatprep.subr.bf16.mxu0 0
      %386 = vmatpush2.bf16.msra.mxu0 0
      %387 = vmatprep.subr.bf16.mxu0 0
      %388 = vmatpush2.bf16.msra.mxu0 0
      %389 = vmatprep.subr.bf16.mxu0 0
      %390 = vmatpush2.bf16.msra.mxu0 0
      %391 = vmatprep.subr.bf16.mxu0 0
      %392 = vmatpush2.bf16.msra.mxu0 0
      %393 = vmatprep.subr.bf16.mxu0 0
      %394 = vmatpush2.bf16.msra.mxu0 0
      %395 = vmatprep.subr.bf16.mxu0 0
      %396 = vmatpush2.bf16.msra.mxu0 0
      %397 = vmatprep.mubr.bf16.mxu0 0
      %398 = vmatmul.mubr.bf16.gmra.mxu0 %v288
      %v399 = vpop.f32.mrf.mxu0
      %v400 = vadd.f32 %v315, %v399
      %v401 = vpop.f32.mrf.mxu0
      %v402 = vpop.f32.mrf.mxu0
      %v403 = vadd.f32 %v315, %v402
      %v404 = vpop.f32.mrf.mxu0
      %405 = vmatprep.mubr.bf16.mxu0 0
      %406 = vmatmul.mubr.bf16.gmra.mxu0 %v289
      %v407 = vpop.f32.mrf.mxu0
      %v408 = vadd.f32 %v315, %v407
      %v409 = vpop.f32.mrf.mxu0
      %v410 = vpop.f32.mrf.mxu0
      %v411 = vadd.f32 %v315, %v410
      %v412 = vpop.f32.mrf.mxu0
      %413 = vmatprep.mubr.bf16.mxu0 0
      %414 = vmatmul.mubr.bf16.gmra.mxu0 %v290
      %v415 = vpop.f32.mrf.mxu0
      %v416 = vadd.f32 %v315, %v415
      %v417 = vpop.f32.mrf.mxu0
      %v418 = vpop.f32.mrf.mxu0
      %v419 = vadd.f32 %v315, %v418
      %v420 = vpop.f32.mrf.mxu0
      %421 = vmatprep.mubr.bf16.mxu0 0
      %422 = vmatmul.mubr.bf16.gmra.mxu0 %v291
      %v423 = vpop.f32.mrf.mxu0
      %v424 = vadd.f32 %v315, %v423
      %v425 = vpop.f32.mrf.mxu0
      %v426 = vpop.f32.mrf.mxu0
      %v427 = vadd.f32 %v315, %v426
      %v428 = vpop.f32.mrf.mxu0
      %429 = vdwg.mxu0
      %v430 = vmax.f32 %v400, 0.0
      %v431 = vmax.f32 %v403, 0.0
      %v432 = vmax.f32 %v408, 0.0
      %v433 = vmax.f32 %v411, 0.0
      %v434 = vmax.f32 %v416, 0.0
      %v435 = vmax.f32 %v419, 0.0
      %v436 = vmax.f32 %v424, 0.0
      %v437 = vmax.f32 %v427, 0.0
      %v438 = vpack.c.bf16 %v431, %v430
      %v439 = vpack.c.bf16 %v433, %v432
      %v440 = vpack.c.bf16 %v435, %v434
      %v441 = vpack.c.bf16 %v437, %v436
      %s442 = scalar_lea.vmem %s1, 128
      %v443 = vld [vmem:[%s442] sm:$0xf]
      %v444 = vld [vmem:[%s442 + $0x4] sm:$0xf]
      %v445 = vld [vmem:[%s442 + $0x8] sm:$0xf]
      %v446 = vld [vmem:[%s442 + $0xc] sm:$0xf]
      %v447 = vld [vmem:[%s442 + $0x10] sm:$0xf]
      %v448 = vld [vmem:[%s442 + $0x14] sm:$0xf]
      %v449 = vld [vmem:[%s442 + $0x18] sm:$0xf]
      %v450 = vld [vmem:[%s442 + $0x1c] sm:$0xf]
      %v451 = vld [vmem:[%s442 + $0x20] sm:$0xf]
      %v452 = vld [vmem:[%s442 + $0x24] sm:$0xf]
      %v453 = vld [vmem:[%s442 + $0x28] sm:$0xf]
      %v454 = vld [vmem:[%s442 + $0x2c] sm:$0xf]
      %v455 = vld [vmem:[%s442 + $0x30] sm:$0xf]
      %v456 = vld [vmem:[%s442 + $0x34] sm:$0xf]
      %v457 = vld [vmem:[%s442 + $0x38] sm:$0xf]
      %v458 = vld [vmem:[%s442 + $0x3c] sm:$0xf]
      %s459 = scalar_lea.vmem %s2, 2
      %v460 = vld [vmem:[%s459] sm:$0x1]
      %v462 = vlaneseq
      %v463 = vshrl.u32 %v462, 7
      %v464 = vsub.s32 0, %v463
      %v465 = vrot.slane %v460, %v464
      %v483 = vunpack.c.l.b16 %v443
      %v484 = vunpack.c.l.b16 %v444
      %v485 = vunpack.c.l.b16 %v445
      %v486 = vunpack.c.l.b16 %v446
      %v487 = vunpack.c.l.b16 %v447
      %v488 = vunpack.c.l.b16 %v448
      %v489 = vunpack.c.l.b16 %v449
      %v490 = vunpack.c.l.b16 %v450
      %v491 = vunpack.c.l.b16 %v451
      %v492 = vunpack.c.l.b16 %v452
      %v493 = vunpack.c.l.b16 %v453
      %v494 = vunpack.c.l.b16 %v454
      %v495 = vunpack.c.l.b16 %v455
      %v496 = vunpack.c.l.b16 %v456
      %v497 = vunpack.c.l.b16 %v457
      %v498 = vunpack.c.l.b16 %v458
      %v499 = vpack.c.b16 %v484, %v483
      %v500 = vpack.c.b16 %v486, %v485
      %v501 = vpack.c.b16 %v488, %v487
      %v502 = vpack.c.b16 %v490, %v489
      %v503 = vpack.c.b16 %v492, %v491
      %v504 = vpack.c.b16 %v494, %v493
      %v505 = vpack.c.b16 %v496, %v495
      %v506 = vpack.c.b16 %v498, %v497
      %515 = vmatprep.subr.bf16.mxu0 0
      %516 = vmatpush1.bf16.msra.mxu0 %v506
      %517 = vmatprep.subr.bf16.mxu0 0
      %518 = vmatpush1.bf16.msra.mxu0 %v505
      %519 = vmatprep.subr.bf16.mxu0 0
      %520 = vmatpush1.bf16.msra.mxu0 %v504
      %521 = vmatprep.subr.bf16.mxu0 0
      %522 = vmatpush1.bf16.msra.mxu0 %v503
      %523 = vmatprep.subr.bf16.mxu0 0
      %524 = vmatpush1.bf16.msra.mxu0 %v502
      %525 = vmatprep.subr.bf16.mxu0 0
      %526 = vmatpush1.bf16.msra.mxu0 %v501
      %527 = vmatprep.subr.bf16.mxu0 0
      %528 = vmatpush1.bf16.msra.mxu0 %v500
      %529 = vmatprep.subr.bf16.mxu0 0
      %530 = vmatpush1.bf16.msra.mxu0 %v499
      %531 = vmatprep.subr.bf16.mxu0 0
      %532 = vmatpush2.bf16.msra.mxu0 0
      %533 = vmatprep.subr.bf16.mxu0 0
      %534 = vmatpush2.bf16.msra.mxu0 0
      %535 = vmatprep.subr.bf16.mxu0 0
      %536 = vmatpush2.bf16.msra.mxu0 0
      %537 = vmatprep.subr.bf16.mxu0 0
      %538 = vmatpush2.bf16.msra.mxu0 0
      %539 = vmatprep.subr.bf16.mxu0 0
      %540 = vmatpush2.bf16.msra.mxu0 0
      %541 = vmatprep.subr.bf16.mxu0 0
      %542 = vmatpush2.bf16.msra.mxu0 0
      %543 = vmatprep.subr.bf16.mxu0 0
      %544 = vmatpush2.bf16.msra.mxu0 0
      %545 = vmatprep.subr.bf16.mxu0 0
      %546 = vmatpush2.bf16.msra.mxu0 0
      %547 = vmatprep.mubr.bf16.mxu0 0
      %548 = vmatmul.mubr.bf16.gmra.mxu0 %v438
      %v549 = vpop.f32.mrf.mxu0
      %v550 = vadd.f32 %v465, %v549
      %v551 = vpop.f32.mrf.mxu0
      %v552 = vpop.f32.mrf.mxu0
      %v553 = vadd.f32 %v465, %v552
      %v554 = vpop.f32.mrf.mxu0
      %555 = vmatprep.mubr.bf16.mxu0 0
      %556 = vmatmul.mubr.bf16.gmra.mxu0 %v439
      %v557 = vpop.f32.mrf.mxu0
      %v558 = vadd.f32 %v465, %v557
      %v559 = vpop.f32.mrf.mxu0
      %v560 = vpop.f32.mrf.mxu0
      %v561 = vadd.f32 %v465, %v560
      %v562 = vpop.f32.mrf.mxu0
      %563 = vmatprep.mubr.bf16.mxu0 0
      %564 = vmatmul.mubr.bf16.gmra.mxu0 %v440
      %v565 = vpop.f32.mrf.mxu0
      %v566 = vadd.f32 %v465, %v565
      %v567 = vpop.f32.mrf.mxu0
      %v568 = vpop.f32.mrf.mxu0
      %v569 = vadd.f32 %v465, %v568
      %v570 = vpop.f32.mrf.mxu0
      %571 = vmatprep.mubr.bf16.mxu0 0
      %572 = vmatmul.mubr.bf16.gmra.mxu0 %v441
      %v573 = vpop.f32.mrf.mxu0
      %v574 = vadd.f32 %v465, %v573
      %v575 = vpop.f32.mrf.mxu0
      %v576 = vpop.f32.mrf.mxu0
      %v577 = vadd.f32 %v465, %v576
      %v578 = vpop.f32.mrf.mxu0
      %579 = vdwg.mxu0
      %v580 = vmax.f32 %v550, 0.0
      %v581 = vmax.f32 %v553, 0.0
      %v582 = vmax.f32 %v558, 0.0
      %v583 = vmax.f32 %v561, 0.0
      %v584 = vmax.f32 %v566, 0.0
      %v585 = vmax.f32 %v569, 0.0
      %v586 = vmax.f32 %v574, 0.0
      %v587 = vmax.f32 %v577, 0.0
      %v588 = vpack.c.bf16 %v581, %v580
      %v589 = vpack.c.bf16 %v583, %v582
      %v590 = vpack.c.bf16 %v585, %v584
      %v591 = vpack.c.bf16 %v587, %v586
      %s592 = scalar_lea.vmem %s1, 192
      %v593 = vld [vmem:[%s592] sm:$0xf]
      %v594 = vld [vmem:[%s592 + $0x4] sm:$0xf]
      %v595 = vld [vmem:[%s592 + $0x8] sm:$0xf]
      %v596 = vld [vmem:[%s592 + $0xc] sm:$0xf]
      %v597 = vld [vmem:[%s592 + $0x10] sm:$0xf]
      %v598 = vld [vmem:[%s592 + $0x14] sm:$0xf]
      %v599 = vld [vmem:[%s592 + $0x18] sm:$0xf]
      %v600 = vld [vmem:[%s592 + $0x1c] sm:$0xf]
      %v601 = vld [vmem:[%s592 + $0x20] sm:$0xf]
      %v602 = vld [vmem:[%s592 + $0x24] sm:$0xf]
      %v603 = vld [vmem:[%s592 + $0x28] sm:$0xf]
      %v604 = vld [vmem:[%s592 + $0x2c] sm:$0xf]
      %v605 = vld [vmem:[%s592 + $0x30] sm:$0xf]
      %v606 = vld [vmem:[%s592 + $0x34] sm:$0xf]
      %v607 = vld [vmem:[%s592 + $0x38] sm:$0xf]
      %v608 = vld [vmem:[%s592 + $0x3c] sm:$0xf]
      %s609 = scalar_lea.vmem %s2, 3
      %v610 = vld [vmem:[%s609] sm:$0x1]
      %v612 = vlaneseq
      %v613 = vshrl.u32 %v612, 7
      %v614 = vsub.s32 0, %v613
      %v615 = vrot.slane %v610, %v614
      %v633 = vunpack.c.l.b16 %v593
      %v634 = vunpack.c.l.b16 %v594
      %v635 = vunpack.c.l.b16 %v595
      %v636 = vunpack.c.l.b16 %v596
      %v637 = vunpack.c.l.b16 %v597
      %v638 = vunpack.c.l.b16 %v598
      %v639 = vunpack.c.l.b16 %v599
      %v640 = vunpack.c.l.b16 %v600
      %v641 = vunpack.c.l.b16 %v601
      %v642 = vunpack.c.l.b16 %v602
      %v643 = vunpack.c.l.b16 %v603
      %v644 = vunpack.c.l.b16 %v604
      %v645 = vunpack.c.l.b16 %v605
      %v646 = vunpack.c.l.b16 %v606
      %v647 = vunpack.c.l.b16 %v607
      %v648 = vunpack.c.l.b16 %v608
      %v649 = vpack.c.b16 %v634, %v633
      %v650 = vpack.c.b16 %v636, %v635
      %v651 = vpack.c.b16 %v638, %v637
      %v652 = vpack.c.b16 %v640, %v639
      %v653 = vpack.c.b16 %v642, %v641
      %v654 = vpack.c.b16 %v644, %v643
      %v655 = vpack.c.b16 %v646, %v645
      %v656 = vpack.c.b16 %v648, %v647
      %665 = vmatprep.subr.bf16.mxu0 0
      %666 = vmatpush1.bf16.msra.mxu0 %v656
      %667 = vmatprep.subr.bf16.mxu0 0
      %668 = vmatpush1.bf16.msra.mxu0 %v655
      %669 = vmatprep.subr.bf16.mxu0 0
      %670 = vmatpush1.bf16.msra.mxu0 %v654
      %671 = vmatprep.subr.bf16.mxu0 0
      %672 = vmatpush1.bf16.msra.mxu0 %v653
      %673 = vmatprep.subr.bf16.mxu0 0
      %674 = vmatpush1.bf16.msra.mxu0 %v652
      %675 = vmatprep.subr.bf16.mxu0 0
      %676 = vmatpush1.bf16.msra.mxu0 %v651
      %677 = vmatprep.subr.bf16.mxu0 0
      %678 = vmatpush1.bf16.msra.mxu0 %v650
      %679 = vmatprep.subr.bf16.mxu0 0
      %680 = vmatpush1.bf16.msra.mxu0 %v649
      %681 = vmatprep.subr.bf16.mxu0 0
      %682 = vmatpush2.bf16.msra.mxu0 0
      %683 = vmatprep.subr.bf16.mxu0 0
      %684 = vmatpush2.bf16.msra.mxu0 0
      %685 = vmatprep.subr.bf16.mxu0 0
      %686 = vmatpush2.bf16.msra.mxu0 0
      %687 = vmatprep.subr.bf16.mxu0 0
      %688 = vmatpush2.bf16.msra.mxu0 0
      %689 = vmatprep.subr.bf16.mxu0 0
      %690 = vmatpush2.bf16.msra.mxu0 0
      %691 = vmatprep.subr.bf16.mxu0 0
      %692 = vmatpush2.bf16.msra.mxu0 0
      %693 = vmatprep.subr.bf16.mxu0 0
      %694 = vmatpush2.bf16.msra.mxu0 0
      %695 = vmatprep.subr.bf16.mxu0 0
      %696 = vmatpush2.bf16.msra.mxu0 0
      %697 = vmatprep.mubr.bf16.mxu0 0
      %698 = vmatmul.mubr.bf16.gmra.mxu0 %v588
      %v699 = vpop.f32.mrf.mxu0
      %v700 = vadd.f32 %v615, %v699
      %v701 = vpop.f32.mrf.mxu0
      %v702 = vpop.f32.mrf.mxu0
      %v703 = vadd.f32 %v615, %v702
      %v704 = vpop.f32.mrf.mxu0
      %705 = vmatprep.mubr.bf16.mxu0 0
      %706 = vmatmul.mubr.bf16.gmra.mxu0 %v589
      %v707 = vpop.f32.mrf.mxu0
      %v708 = vadd.f32 %v615, %v707
      %v709 = vpop.f32.mrf.mxu0
      %v710 = vpop.f32.mrf.mxu0
      %v711 = vadd.f32 %v615, %v710
      %v712 = vpop.f32.mrf.mxu0
      %713 = vmatprep.mubr.bf16.mxu0 0
      %714 = vmatmul.mubr.bf16.gmra.mxu0 %v590
      %v715 = vpop.f32.mrf.mxu0
      %v716 = vadd.f32 %v615, %v715
      %v717 = vpop.f32.mrf.mxu0
      %v718 = vpop.f32.mrf.mxu0
      %v719 = vadd.f32 %v615, %v718
      %v720 = vpop.f32.mrf.mxu0
      %721 = vmatprep.mubr.bf16.mxu0 0
      %722 = vmatmul.mubr.bf16.gmra.mxu0 %v591
      %v723 = vpop.f32.mrf.mxu0
      %v724 = vadd.f32 %v615, %v723
      %v725 = vpop.f32.mrf.mxu0
      %v726 = vpop.f32.mrf.mxu0
      %v727 = vadd.f32 %v615, %v726
      %v728 = vpop.f32.mrf.mxu0
      %729 = vdwg.mxu0
      %v730 = vmax.f32 %v700, 0.0
      %v731 = vmax.f32 %v703, 0.0
      %v732 = vmax.f32 %v708, 0.0
      %v733 = vmax.f32 %v711, 0.0
      %v734 = vmax.f32 %v716, 0.0
      %v735 = vmax.f32 %v719, 0.0
      %v736 = vmax.f32 %v724, 0.0
      %v737 = vmax.f32 %v727, 0.0
      %v738 = vpack.c.bf16 %v731, %v730
      %v739 = vpack.c.bf16 %v733, %v732
      %v740 = vpack.c.bf16 %v735, %v734
      %v741 = vpack.c.bf16 %v737, %v736
      %s742 = scalar_lea.vmem %s1, 256
      %v743 = vld [vmem:[%s742] sm:$0xf]
      %v744 = vld [vmem:[%s742 + $0x4] sm:$0xf]
      %v745 = vld [vmem:[%s742 + $0x8] sm:$0xf]
      %v746 = vld [vmem:[%s742 + $0xc] sm:$0xf]
      %v747 = vld [vmem:[%s742 + $0x10] sm:$0xf]
      %v748 = vld [vmem:[%s742 + $0x14] sm:$0xf]
      %v749 = vld [vmem:[%s742 + $0x18] sm:$0xf]
      %v750 = vld [vmem:[%s742 + $0x1c] sm:$0xf]
      %v751 = vld [vmem:[%s742 + $0x20] sm:$0xf]
      %v752 = vld [vmem:[%s742 + $0x24] sm:$0xf]
      %v753 = vld [vmem:[%s742 + $0x28] sm:$0xf]
      %v754 = vld [vmem:[%s742 + $0x2c] sm:$0xf]
      %v755 = vld [vmem:[%s742 + $0x30] sm:$0xf]
      %v756 = vld [vmem:[%s742 + $0x34] sm:$0xf]
      %v757 = vld [vmem:[%s742 + $0x38] sm:$0xf]
      %v758 = vld [vmem:[%s742 + $0x3c] sm:$0xf]
      %s759 = scalar_lea.vmem %s2, 4
      %v760 = vld [vmem:[%s759] sm:$0x1]
      %v762 = vlaneseq
      %v763 = vshrl.u32 %v762, 7
      %v764 = vsub.s32 0, %v763
      %v765 = vrot.slane %v760, %v764
      %v783 = vunpack.c.l.b16 %v743
      %v784 = vunpack.c.l.b16 %v744
      %v785 = vunpack.c.l.b16 %v745
      %v786 = vunpack.c.l.b16 %v746
      %v787 = vunpack.c.l.b16 %v747
      %v788 = vunpack.c.l.b16 %v748
      %v789 = vunpack.c.l.b16 %v749
      %v790 = vunpack.c.l.b16 %v750
      %v791 = vunpack.c.l.b16 %v751
      %v792 = vunpack.c.l.b16 %v752
      %v793 = vunpack.c.l.b16 %v753
      %v794 = vunpack.c.l.b16 %v754
      %v795 = vunpack.c.l.b16 %v755
      %v796 = vunpack.c.l.b16 %v756
      %v797 = vunpack.c.l.b16 %v757
      %v798 = vunpack.c.l.b16 %v758
      %v799 = vpack.c.b16 %v784, %v783
      %v800 = vpack.c.b16 %v786, %v785
      %v801 = vpack.c.b16 %v788, %v787
      %v802 = vpack.c.b16 %v790, %v789
      %v803 = vpack.c.b16 %v792, %v791
      %v804 = vpack.c.b16 %v794, %v793
      %v805 = vpack.c.b16 %v796, %v795
      %v806 = vpack.c.b16 %v798, %v797
      %815 = vmatprep.subr.bf16.mxu0 0
      %816 = vmatpush1.bf16.msra.mxu0 %v806
      %817 = vmatprep.subr.bf16.mxu0 0
      %818 = vmatpush1.bf16.msra.mxu0 %v805
      %819 = vmatprep.subr.bf16.mxu0 0
      %820 = vmatpush1.bf16.msra.mxu0 %v804
      %821 = vmatprep.subr.bf16.mxu0 0
      %822 = vmatpush1.bf16.msra.mxu0 %v803
      %823 = vmatprep.subr.bf16.mxu0 0
      %824 = vmatpush1.bf16.msra.mxu0 %v802
      %825 = vmatprep.subr.bf16.mxu0 0
      %826 = vmatpush1.bf16.msra.mxu0 %v801
      %827 = vmatprep.subr.bf16.mxu0 0
      %828 = vmatpush1.bf16.msra.mxu0 %v800
      %829 = vmatprep.subr.bf16.mxu0 0
      %830 = vmatpush1.bf16.msra.mxu0 %v799
      %831 = vmatprep.subr.bf16.mxu0 0
      %832 = vmatpush2.bf16.msra.mxu0 0
      %833 = vmatprep.subr.bf16.mxu0 0
      %834 = vmatpush2.bf16.msra.mxu0 0
      %835 = vmatprep.subr.bf16.mxu0 0
      %836 = vmatpush2.bf16.msra.mxu0 0
      %837 = vmatprep.subr.bf16.mxu0 0
      %838 = vmatpush2.bf16.msra.mxu0 0
      %839 = vmatprep.subr.bf16.mxu0 0
      %840 = vmatpush2.bf16.msra.mxu0 0
      %841 = vmatprep.subr.bf16.mxu0 0
      %842 = vmatpush2.bf16.msra.mxu0 0
      %843 = vmatprep.subr.bf16.mxu0 0
      %844 = vmatpush2.bf16.msra.mxu0 0
      %845 = vmatprep.subr.bf16.mxu0 0
      %846 = vmatpush2.bf16.msra.mxu0 0
      %847 = vmatprep.mubr.bf16.mxu0 0
      %848 = vmatmul.mubr.bf16.gmra.mxu0 %v738
      %v849 = vpop.f32.mrf.mxu0
      %v850 = vadd.f32 %v765, %v849
      %v851 = vpop.f32.mrf.mxu0
      %v852 = vpop.f32.mrf.mxu0
      %v853 = vadd.f32 %v765, %v852
      %v854 = vpop.f32.mrf.mxu0
      %855 = vmatprep.mubr.bf16.mxu0 0
      %856 = vmatmul.mubr.bf16.gmra.mxu0 %v739
      %v857 = vpop.f32.mrf.mxu0
      %v858 = vadd.f32 %v765, %v857
      %v859 = vpop.f32.mrf.mxu0
      %v860 = vpop.f32.mrf.mxu0
      %v861 = vadd.f32 %v765, %v860
      %v862 = vpop.f32.mrf.mxu0
      %863 = vmatprep.mubr.bf16.mxu0 0
      %864 = vmatmul.mubr.bf16.gmra.mxu0 %v740
      %v865 = vpop.f32.mrf.mxu0
      %v866 = vadd.f32 %v765, %v865
      %v867 = vpop.f32.mrf.mxu0
      %v868 = vpop.f32.mrf.mxu0
      %v869 = vadd.f32 %v765, %v868
      %v870 = vpop.f32.mrf.mxu0
      %871 = vmatprep.mubr.bf16.mxu0 0
      %872 = vmatmul.mubr.bf16.gmra.mxu0 %v741
      %v873 = vpop.f32.mrf.mxu0
      %v874 = vadd.f32 %v765, %v873
      %v875 = vpop.f32.mrf.mxu0
      %v876 = vpop.f32.mrf.mxu0
      %v877 = vadd.f32 %v765, %v876
      %v878 = vpop.f32.mrf.mxu0
      %879 = vdwg.mxu0
      %v880 = vmax.f32 %v850, 0.0
      %v881 = vmax.f32 %v853, 0.0
      %v882 = vmax.f32 %v858, 0.0
      %v883 = vmax.f32 %v861, 0.0
      %v884 = vmax.f32 %v866, 0.0
      %v885 = vmax.f32 %v869, 0.0
      %v886 = vmax.f32 %v874, 0.0
      %v887 = vmax.f32 %v877, 0.0
      %888 = vst [vmem:[%s172] sm:$0xff] %v880
      %889 = vst [vmem:[%s172 + $0x8] sm:$0xff] %v881
      %890 = vst [vmem:[%s172 + $0x10] sm:$0xff] %v882
      %891 = vst [vmem:[%s172 + $0x18] sm:$0xff] %v883
      %892 = vst [vmem:[%s172 + $0x20] sm:$0xff] %v884
      %893 = vst [vmem:[%s172 + $0x28] sm:$0xff] %v885
      %894 = vst [vmem:[%s172 + $0x30] sm:$0xff] %v886
      %895 = vst [vmem:[%s172 + $0x38] sm:$0xff] %v887
      %s896 = smul.u32 8, %s14
      %p897 = scmp.lt.s32.totalorder %s896, 23
      %s898 = scalar_select %p897, %s896, 23
      %s899 = smul.addr %s898, 8
      %s900 = scalar_lea.vmem %s3, %s899
      // Predicated region
      $region33: #{ffn_forward.1} parent=31 // pred_check
        %p901 = pneg %p100
      $region34: #{ffn_forward.1} parent=31 // pred_check_branch
        %903 = sbr.rel (%p901) target = $region36
      $region35: #{ffn_forward.1} parent=31 // pred_region
        %s904 = smul.u32 8, %s14
      $region36: #{ffn_forward.1} parent=31 // pred_fallthru
        _
    $region32: #{ffn_forward.1} parent=5 // pred_fallthru
      _
    %p905 = scmp.le.s32.totalorder 2, %s9
    // Predicated region
    $region37: #{ffn_forward.1} parent=5 // pred_check
      %p906 = pneg %p905
    $region38: #{ffn_forward.1} parent=5 // pred_check_branch
      %908 = sbr.rel (%p906) target = $region40
    $region39: #{ffn_forward.1} parent=5 // pred_region
      %s909 = ssub.s32 %s9, 2
      // Predicated region
      $region41: #{ffn_forward.1} parent=39 // pred_check
        %p910 = pneg %p106
      $region42: #{ffn_forward.1} parent=39 // pred_check_branch
        %912 = sbr.rel (%p910) target = $region44
      $region43: #{ffn_forward.1} parent=39 // pred_region
        %s913 = smul.u32 8, %s15
        %p914 = scmp.lt.s32.totalorder %s913, 23
        %s915 = scalar_select %p914, %s913, 23
        %s916 = smul.addr %s915, 8
        %s917 = scalar_lea.vmem %s3, %s916
      $region44: #{ffn_forward.1} parent=39 // pred_fallthru
        _
    $region40: #{ffn_forward.1} parent=5 // pred_fallthru
      _
  $region6: #{ffn_forward.1} parent=0 // loop_footer
    %s13 = sadd.s32 1, %s9
  $region7: #{ffn_forward.1} parent=0 // loop_footer_branch
    %8 = sbr.rel target = $region3
  $region8: #{ffn_forward.1} parent=0 // loop_exit
    _

</llo_original>
